<compile_context>
chip_gen: v7x
topology: tpu7x:2x2x1
jax: 0.10.0
libtpu: 0.0.40
codegen_flags: <defaults>
</compile_context>

<pallas_src>
import functools
import math

import jax
import jax.numpy as jnp
from jax import lax
from jax.experimental import pallas as pl
from jax.experimental.pallas import tpu as pltpu

BN_EPS = 1e-5  # PyTorch BatchNorm2d default


def _round_up(a, b):
    return (a + b - 1) // b * b


def _fill_slab(taps, cin, tm, x_ref, halo_ref, ml_ref, mr_ref, slab_ref):
    """Build the [9*cin, tm] bf16 im2col slab for the current M tile.

    taps: 9 static (offset, dj) pairs.  Each tap copies a shifted window of the
    tile (main block + small halo) into its row-block of the slab; dj=+/-1 taps
    are multiplied by the resident column-boundary masks (replacing W padding).
    """
    for k, (off, dj) in enumerate(taps):
        lo = k * cin
        mref = ml_ref if dj < 0 else (mr_ref if dj > 0 else None)
        if off == 0:
            a = x_ref[0]
            if mref is not None:
                a = a * mref[...]
            slab_ref[lo:lo + cin, :] = a
        else:
            na = tm - off
            a = x_ref[0, :, off:]                 # (cin, tm-off) from main block
            b = halo_ref[0, 0, :, :off]           # (cin, off)    from halo block
            if mref is not None:
                a = a * mref[:, :na]
                b = b * mref[:, na:]
            slab_ref[lo:lo + cin, :na] = a
            slab_ref[lo:lo + cin, na:] = b


def _conv_out_kernel(taps, cin, tm, with_scale, *refs):
    """out = conv * scale + shift  (scale only when rescale=True)."""
    if with_scale:
        (x_ref, halo_ref, ml_ref, mr_ref, w_ref, scale_ref, shift_ref,
         out_ref, slab_ref) = refs
    else:
        (x_ref, halo_ref, ml_ref, mr_ref, w_ref, shift_ref,
         out_ref, slab_ref) = refs
        scale_ref = None
    _fill_slab(taps, cin, tm, x_ref, halo_ref, ml_ref, mr_ref, slab_ref)
    y = jnp.dot(w_ref[...], slab_ref[...], preferred_element_type=jnp.float32)
    if with_scale:
        y = y * scale_ref[...]
    out_ref[0] = y + shift_ref[...]


def _conv_stats_kernel(taps, cin, tm, tpi_s, nth, hw_out,
                       x_ref, halo_ref, ml_ref, mr_ref, w_ref,
                       sum_ref, sumsq_ref, slab_ref):
    """Per-channel sum / sum-of-squares of the bias-less conv output.

    Grid is (2, nth): leading axis is the core-split (each core owns its own
    accumulator column), trailing axis is the reduction over flattened
    (image, tile) work items.  Final-tile overhang positions are masked via an
    in-kernel iota compare (no mask stream from HBM).
    """
    @pl.when(pl.program_id(1) == 0)
    def _init():
        sum_ref[...] = jnp.zeros_like(sum_ref)
        sumsq_ref[...] = jnp.zeros_like(sumsq_ref)

    _fill_slab(taps, cin, tm, x_ref, halo_ref, ml_ref, mr_ref, slab_ref)
    y = jnp.dot(w_ref[...], slab_ref[...], preferred_element_type=jnp.float32)

    flat = pl.program_id(0) * nth + pl.program_id(1)
    t = flat % tpi_s                                  # tile index within image
    pos = lax.broadcasted_iota(jnp.int32, (1, tm), 1) + t * tm
    valid = (pos < hw_out).astype(jnp.float32)        # drop overhang positions
    ym = y * valid
    sum_ref[0] = sum_ref[0] + jnp.sum(ym, axis=1, keepdims=True)
    sumsq_ref[0] = sumsq_ref[0] + jnp.sum(ym * y, axis=1, keepdims=True)


@functools.partial(jax.jit, static_argnames=("rescale",))
def layer_wrapper_2d(x_nchw, conv_w, conv_b, bn_gamma, bn_beta, *, rescale=False):
    """Forward of LayerWrapper2D(layer=Conv2d(Cin,Cout,3,pad=1), rescale=rescale).

    x_nchw: [N, Cin, H, W] float32.  Returns [N, Cout, H, W] float32.
    """
    n, cin, h, w = x_nchw.shape
    cout, _, kh, kw = conv_w.shape
    assert (kh, kw) == (3, 3), "LayerWrapper2D kernel specialised for 3x3, pad=1"

    # ---- tiling ------------------------------------------------------------------
    # M tile spans per-image interior output positions; multiple of lcm(W,128) so
    # every tile starts at a row boundary (column masks are tile-invariant) and the
    # lane axis stays dense.  Capped around 8K lanes (per-step VMEM ~1.7 MB).
    lcm_wl = (w * 128) // math.gcd(w, 128)
    halo_w = _round_up(2 * w + 2, 128)                 # max tap reach, lane-rounded
    tm = _round_up(min(h * w, 8192), lcm_wl)
    tm = max(tm, _round_up(halo_w, lcm_wl))
    tpi = -(-(h * w) // tm)                            # tiles per image
    tpi_s = tpi + (tpi % 2)                            # even -> clean 2-way stats split
    lp = tpi_s * tm + halo_w                           # padded per-image frame length
    fp = (h + 2) * w                                   # H-padded frame (no W padding)

    # ---- wrapper-side layout plumbing (glue) ---------------------------------------
    # Pad H only, flatten per image, shift by 1 so all 9 tap offsets are >= 0.
    xr = jnp.pad(x_nchw, ((0, 0), (0, 0), (1, 1), (0, 0))).astype(jnp.bfloat16)
    xr = xr.reshape(n, cin, fp)
    xs = jnp.pad(xr, ((0, 0), (0, 0), (1, lp - fp - 1)))          # (n, cin, lp)

    # Small pre-extracted halos: halo[n, t] = xs[n, :, (t+1)*tm : (t+1)*tm + halo_w].
    starts = (jnp.arange(tpi_s) + 1) * tm
    halo = jax.vmap(lambda s: lax.dynamic_slice_in_dim(xs, s, halo_w, axis=2))(starts)
    halo = jnp.moveaxis(halo, 0, 1)                               # (n, tpi_s, cin, halo_w)

    # Resident column-boundary masks (replace the missing W padding for dj=+/-1 taps).
    col = jnp.arange(tm) % w
    mask_l = (col != 0).astype(jnp.bfloat16)[None, :]             # zero where c == 0
    mask_r = (col != w - 1).astype(jnp.bfloat16)[None, :]         # zero where c == W-1

    # Flattened weights [Cout, 9*Cin]; tap order matches slab row-block order.
    w_flat = jnp.transpose(conv_w, (0, 2, 3, 1)).reshape(cout, 9 * cin).astype(jnp.bfloat16)
    taps = tuple(((1 + di) * w + dj + 1, dj) for di in (-1, 0, 1) for dj in (-1, 0, 1))

    w_spec = pl.BlockSpec((cout, 9 * cin), lambda i, t: (0, 0))   # resident
    col_spec = pl.BlockSpec((cout, 1), lambda i, t: (0, 0))       # per-channel columns
    slab = pltpu.VMEM((9 * cin, tm), jnp.bfloat16)

    if rescale:
        # ---- pass 1: fused conv + per-channel sum / sum-of-squares ------------------
        nth = (n * tpi_s) // 2                                    # work items per core

        def _x_map(c, i):
            f = c * nth + i
            return (f // tpi_s, 0, f % tpi_s)

        def _h_map(c, i):
            f = c * nth + i
            return (f // tpi_s, f % tpi_s, 0, 0)

        sums, sumsqs = pl.pallas_call(
            functools.partial(_conv_stats_kernel, taps, cin, tm, tpi_s, nth, h * w),
            grid=(2, nth),
            in_specs=[pl.BlockSpec((1, cin, tm), _x_map),
                      pl.BlockSpec((1, 1, cin, halo_w), _h_map),
                      pl.BlockSpec((1, tm), lambda c, i: (0, 0)),
                      pl.BlockSpec((1, tm), lambda c, i: (0, 0)),
                      pl.BlockSpec((cout, 9 * cin), lambda c, i: (0, 0))],
            out_specs=(pl.BlockSpec((1, cout, 1), lambda c, i: (c, 0, 0)),
                       pl.BlockSpec((1, cout, 1), lambda c, i: (c, 0, 0))),
            out_shape=(jax.ShapeDtypeStruct((2, cout, 1), jnp.float32),
                       jax.ShapeDtypeStruct((2, cout, 1), jnp.float32)),
            scratch_shapes=[slab],
            compiler_params=pltpu.CompilerParams(
                dimension_semantics=("parallel", "arbitrary")),   # core split x reduction
        )(xs, halo, mask_l, mask_r, w_flat)

        s = sums[0] + sums[1]
        ss = sumsqs[0] + sumsqs[1]
        count = jnp.float32(n * h * w)
        mean_c = s / count                        # mean of raw conv (bias-less)
        # TODO(synk): one-pass E[y^2]-E[y]^2 in f32 can cancel when |mean|>>std at very
        # large N*H*W; a shifted / two-pass reduction would be safer at extreme sizes.
        var = ss / count - mean_c * mean_c        # biased var (BN normalization)
        inv = lax.rsqrt(var + BN_EPS)
        scale = bn_gamma.reshape(cout, 1).astype(jnp.float32) * inv
        # BN(conv + b) = (conv - mean_c) * inv * gamma + beta  (conv bias cancels)
        shift = bn_beta.reshape(cout, 1).astype(jnp.float32) - mean_c * scale
    else:
        scale = None
        shift = conv_b.reshape(cout, 1).astype(jnp.float32)       # plain conv bias

    # ---- pass 2 (or only pass): fused conv + affine, writes (N, Cout, H*W) ----------
    out_dim = h * w if h * w >= tm else tm        # avoid a block wider than the array
    in_specs = [pl.BlockSpec((1, cin, tm), lambda i, t: (i, 0, t)),
                pl.BlockSpec((1, 1, cin, halo_w), lambda i, t: (i, t, 0, 0)),
                pl.BlockSpec((1, tm), lambda i, t: (0, 0)),
                pl.BlockSpec((1, tm), lambda i, t: (0, 0)),
                w_spec]
    args = [xs, halo, mask_l, mask_r, w_flat]
    if rescale:
        in_specs.append(col_spec)
        args.append(scale)
    in_specs.append(col_spec)
    args.append(shift)

    y = pl.pallas_call(
        functools.partial(_conv_out_kernel, taps, cin, tm, rescale),
        grid=(n, tpi),
        in_specs=in_specs,
        out_specs=pl.BlockSpec((1, cout, tm), lambda i, t: (i, 0, t)),
        out_shape=jax.ShapeDtypeStruct((n, cout, out_dim), jnp.float32),
        scratch_shapes=[slab],
        compiler_params=pltpu.CompilerParams(
            dimension_semantics=("parallel", "parallel")),        # independent tiles
    )(*args)

    if out_dim != h * w:
        y = y[:, :, :h * w]
    # Free reshape: output is already image-major, channel, interior-position order.
    return y.reshape(n, cout, h, w)


def _reference(x, conv_w, conv_b, bn_gamma, bn_beta, rescale):
    # Reference uses the same bf16 input precision on the conv (MXU path), f32 math.
    xb = x.astype(jnp.bfloat16).astype(jnp.float32)
    wb = conv_w.astype(jnp.bfloat16).astype(jnp.float32)
    y = lax.conv_general_dilated(
        xb, wb, window_strides=(1, 1), padding=((1, 1), (1, 1)),
        dimension_numbers=("NCHW", "OIHW", "NCHW"),
        precision=lax.Precision.HIGHEST)
    y = y + conv_b[None, :, None, None]
    if not rescale:
        return y
    mean = jnp.mean(y, axis=(0, 2, 3), keepdims=True)
    var = jnp.mean((y - mean) ** 2, axis=(0, 2, 3), keepdims=True)
    return ((y - mean) * lax.rsqrt(var + BN_EPS)
            * bn_gamma[None, :, None, None] + bn_beta[None, :, None, None])


if __name__ == "__main__":
    key = jax.random.PRNGKey(0)
    kx, kw_, kb = jax.random.split(key, 3)

    N, CIN, H, W = 2, 4, 16, 16
    COUT = 8

    x = jax.random.normal(kx, (N, CIN, H, W), dtype=jnp.float32)
    conv_w = jax.random.normal(kw_, (COUT, CIN, 3, 3), dtype=jnp.float32) * 0.1
    conv_b = jax.random.normal(kb, (COUT,), dtype=jnp.float32) * 0.1
    bn_gamma = jnp.ones((COUT,), dtype=jnp.float32)   # nn.BatchNorm2d default affine
    bn_beta = jnp.zeros((COUT,), dtype=jnp.float32)

    ok = True
    for rescale in (False, True):
        out = layer_wrapper_2d(x, conv_w, conv_b, bn_gamma, bn_beta, rescale=rescale)
        out = jax.block_until_ready(out)
        ref = _reference(x, conv_w, conv_b, bn_gamma, bn_beta, rescale)
        if not jnp.allclose(out, ref, atol=1e-3, rtol=1e-3):
            ok = False
            print("MISMATCH rescale=%s max_abs_err=%e"
                  % (rescale, float(jnp.max(jnp.abs(out - ref)))))

    if ok:
        print("KERNEL_OK")
</pallas_src>

<mosaic_0001>
module attributes {stable_mosaic.version = 11 : i64} {
  func.func @_conv_out_kernel(%arg0: i32, %arg1: i32, %arg2: memref<1x4x256xbf16, #tpu.memory_space<vmem>>, %arg3: memref<1x1x4x128xbf16, #tpu.memory_space<vmem>>, %arg4: memref<1x256xbf16, #tpu.memory_space<vmem>>, %arg5: memref<1x256xbf16, #tpu.memory_space<vmem>>, %arg6: memref<8x36xbf16, #tpu.memory_space<vmem>>, %arg7: memref<8x1xf32, #tpu.memory_space<vmem>>, %arg8: memref<1x8x256xf32, #tpu.memory_space<vmem>>, %arg9: memref<36x256xbf16, #tpu.memory_space<vmem>>) attributes {dimension_semantics = [#tpu.dimension_semantics<parallel>, #tpu.dimension_semantics<parallel>], iteration_bounds = array<i64: 2, 1>, scalar_prefetch = 0 : i64, scratch_operands = 1 : i64, tpu.core_type = #tpu.core_type<tc>, window_params = [{transform_indices = @transform_0, window_bounds = array<i64: 1, 4, 256>}, {transform_indices = @transform_1, window_bounds = array<i64: 1, 1, 4, 128>}, {pipeline_mode = #tpu.pipeline_mode<synchronous>, transform_indices = @transform_2, window_bounds = array<i64: 1, 256>}, {pipeline_mode = #tpu.pipeline_mode<synchronous>, transform_indices = @transform_3, window_bounds = array<i64: 1, 256>}, {pipeline_mode = #tpu.pipeline_mode<synchronous>, transform_indices = @transform_4, window_bounds = array<i64: 8, 36>}, {pipeline_mode = #tpu.pipeline_mode<synchronous>, transform_indices = @transform_5, window_bounds = array<i64: 8, 1>}, {transform_indices = @transform_6, window_bounds = array<i64: 1, 8, 256>}]} {
    %c0 = arith.constant 0 : index
    %c0_0 = arith.constant 0 : index
    %c0_1 = arith.constant 0 : index
    %0 = vector.load %arg2[%c0, %c0_0, %c0_1] : memref<1x4x256xbf16, #tpu.memory_space<vmem>>, vector<1x4x256xbf16>
    %1 = vector.shape_cast %0 : vector<1x4x256xbf16> to vector<4x256xbf16>
    %c0_2 = arith.constant 0 : index
    %c0_3 = arith.constant 0 : index
    %2 = vector.load %arg4[%c0_2, %c0_3] : memref<1x256xbf16, #tpu.memory_space<vmem>>, vector<1x256xbf16>
    %3 = vector.broadcast %2 : vector<1x256xbf16> to vector<4x256xbf16>
    %4 = arith.mulf %1, %3 : vector<4x256xbf16>
    %c0_4 = arith.constant 0 : index
    %c0_5 = arith.constant 0 : index
    %5 = vector.load %arg9[%c0_4, %c0_5] : memref<36x256xbf16, #tpu.memory_space<vmem>>, vector<4x256xbf16>
    tpu.vector_store %arg9[%c0_4, %c0_5], %4 {strides = array<i32>} : memref<36x256xbf16, #tpu.memory_space<vmem>>, vector<4x256xbf16>,
    %c0_6 = arith.constant 0 : index
    %c0_7 = arith.constant 0 : index
    %c1 = arith.constant 1 : index
    %6 = vector.load %arg2[%c0_6, %c0_7, %c1] : memref<1x4x256xbf16, #tpu.memory_space<vmem>>, vector<1x4x255xbf16>
    %7 = vector.shape_cast %6 : vector<1x4x255xbf16> to vector<4x255xbf16>
    %c0_8 = arith.constant 0 : index
    %c0_9 = arith.constant 0 : index
    %c0_10 = arith.constant 0 : index
    %c0_11 = arith.constant 0 : index
    %8 = vector.load %arg3[%c0_8, %c0_9, %c0_10, %c0_11] : memref<1x1x4x128xbf16, #tpu.memory_space<vmem>>, vector<1x1x4x1xbf16>
    %9 = vector.shape_cast %8 : vector<1x1x4x1xbf16> to vector<4x1xbf16>
    %c4 = arith.constant 4 : index
    %c0_12 = arith.constant 0 : index
    %10 = vector.load %arg9[%c4, %c0_12] : memref<36x256xbf16, #tpu.memory_space<vmem>>, vector<4x255xbf16>
    tpu.vector_store %arg9[%c4, %c0_12], %7 {strides = array<i32>} : memref<36x256xbf16, #tpu.memory_space<vmem>>, vector<4x255xbf16>,
    %c4_13 = arith.constant 4 : index
    %c255 = arith.constant 255 : index
    %11 = vector.load %arg9[%c4_13, %c255] : memref<36x256xbf16, #tpu.memory_space<vmem>>, vector<4x1xbf16>
    tpu.vector_store %arg9[%c4_13, %c255], %9 {strides = array<i32>} : memref<36x256xbf16, #tpu.memory_space<vmem>>, vector<4x1xbf16>,
    %c0_14 = arith.constant 0 : index
    %c0_15 = arith.constant 0 : index
    %c2 = arith.constant 2 : index
    %12 = vector.load %arg2[%c0_14, %c0_15, %c2] : memref<1x4x256xbf16, #tpu.memory_space<vmem>>, vector<1x4x254xbf16>
    %13 = vector.shape_cast %12 : vector<1x4x254xbf16> to vector<4x254xbf16>
    %c0_16 = arith.constant 0 : index
    %c0_17 = arith.constant 0 : index
    %c0_18 = arith.constant 0 : index
    %c0_19 = arith.constant 0 : index
    %14 = vector.load %arg3[%c0_16, %c0_17, %c0_18, %c0_19] : memref<1x1x4x128xbf16, #tpu.memory_space<vmem>>, vector<1x1x4x2xbf16>
    %15 = vector.shape_cast %14 : vector<1x1x4x2xbf16> to vector<4x2xbf16>
    %c0_20 = arith.constant 0 : index
    %c0_21 = arith.constant 0 : index
    %16 = vector.load %arg5[%c0_20, %c0_21] : memref<1x256xbf16, #tpu.memory_space<vmem>>, vector<1x254xbf16>
    %17 = vector.broadcast %16 : vector<1x254xbf16> to vector<4x254xbf16>
    %18 = arith.mulf %13, %17 : vector<4x254xbf16>
    %c0_22 = arith.constant 0 : index
    %c254 = arith.constant 254 : index
    %19 = vector.load %arg5[%c0_22, %c254] : memref<1x256xbf16, #tpu.memory_space<vmem>>, vector<1x2xbf16>
    %20 = vector.broadcast %19 : vector<1x2xbf16> to vector<4x2xbf16>
    %21 = arith.mulf %15, %20 : vector<4x2xbf16>
    %c8 = arith.constant 8 : index
    %c0_23 = arith.constant 0 : index
    %22 = vector.load %arg9[%c8, %c0_23] : memref<36x256xbf16, #tpu.memory_space<vmem>>, vector<4x254xbf16>
    tpu.vector_store %arg9[%c8, %c0_23], %18 {strides = array<i32>} : memref<36x256xbf16, #tpu.memory_space<vmem>>, vector<4x254xbf16>,
    %c8_24 = arith.constant 8 : index
    %c254_25 = arith.constant 254 : index
    %23 = vector.load %arg9[%c8_24, %c254_25] : memref<36x256xbf16, #tpu.memory_space<vmem>>, vector<4x2xbf16>
    tpu.vector_store %arg9[%c8_24, %c254_25], %21 {strides = array<i32>} : memref<36x256xbf16, #tpu.memory_space<vmem>>, vector<4x2xbf16>,
    %c0_26 = arith.constant 0 : index
    %c0_27 = arith.constant 0 : index
    %c16 = arith.constant 16 : index
    %24 = vector.load %arg2[%c0_26, %c0_27, %c16] : memref<1x4x256xbf16, #tpu.memory_space<vmem>>, vector<1x4x240xbf16>
    %25 = vector.shape_cast %24 : vector<1x4x240xbf16> to vector<4x240xbf16>
    %c0_28 = arith.constant 0 : index
    %c0_29 = arith.constant 0 : index
    %c0_30 = arith.constant 0 : index
    %c0_31 = arith.constant 0 : index
    %26 = vector.load %arg3[%c0_28, %c0_29, %c0_30, %c0_31] : memref<1x1x4x128xbf16, #tpu.memory_space<vmem>>, vector<1x1x4x16xbf16>
    %27 = vector.shape_cast %26 : vector<1x1x4x16xbf16> to vector<4x16xbf16>
    %c0_32 = arith.constant 0 : index
    %c0_33 = arith.constant 0 : index
    %28 = vector.load %arg4[%c0_32, %c0_33] : memref<1x256xbf16, #tpu.memory_space<vmem>>, vector<1x240xbf16>
    %29 = vector.broadcast %28 : vector<1x240xbf16> to vector<4x240xbf16>
    %30 = arith.mulf %25, %29 : vector<4x240xbf16>
    %c0_34 = arith.constant 0 : index
    %c240 = arith.constant 240 : index
    %31 = vector.load %arg4[%c0_34, %c240] : memref<1x256xbf16, #tpu.memory_space<vmem>>, vector<1x16xbf16>
    %32 = vector.broadcast %31 : vector<1x16xbf16> to vector<4x16xbf16>
    %33 = arith.mulf %27, %32 : vector<4x16xbf16>
    %c12 = arith.constant 12 : index
    %c0_35 = arith.constant 0 : index
    %34 = vector.load %arg9[%c12, %c0_35] : memref<36x256xbf16, #tpu.memory_space<vmem>>, vector<4x240xbf16>
    tpu.vector_store %arg9[%c12, %c0_35], %30 {strides = array<i32>} : memref<36x256xbf16, #tpu.memory_space<vmem>>, vector<4x240xbf16>,
    %c12_36 = arith.constant 12 : index
    %c240_37 = arith.constant 240 : index
    %35 = vector.load %arg9[%c12_36, %c240_37] : memref<36x256xbf16, #tpu.memory_space<vmem>>, vector<4x16xbf16>
    tpu.vector_store %arg9[%c12_36, %c240_37], %33 {strides = array<i32>} : memref<36x256xbf16, #tpu.memory_space<vmem>>, vector<4x16xbf16>,
    %c0_38 = arith.constant 0 : index
    %c0_39 = arith.constant 0 : index
    %c17 = arith.constant 17 : index
    %36 = vector.load %arg2[%c0_38, %c0_39, %c17] : memref<1x4x256xbf16, #tpu.memory_space<vmem>>, vector<1x4x239xbf16>
    %37 = vector.shape_cast %36 : vector<1x4x239xbf16> to vector<4x239xbf16>
    %c0_40 = arith.constant 0 : index
    %c0_41 = arith.constant 0 : index
    %c0_42 = arith.constant 0 : index
    %c0_43 = arith.constant 0 : index
    %38 = vector.load %arg3[%c0_40, %c0_41, %c0_42, %c0_43] : memref<1x1x4x128xbf16, #tpu.memory_space<vmem>>, vector<1x1x4x17xbf16>
    %39 = vector.shape_cast %38 : vector<1x1x4x17xbf16> to vector<4x17xbf16>
    %c16_44 = arith.constant 16 : index
    %c0_45 = arith.constant 0 : index
    %40 = vector.load %arg9[%c16_44, %c0_45] : memref<36x256xbf16, #tpu.memory_space<vmem>>, vector<4x239xbf16>
    tpu.vector_store %arg9[%c16_44, %c0_45], %37 {strides = array<i32>} : memref<36x256xbf16, #tpu.memory_space<vmem>>, vector<4x239xbf16>,
    %c16_46 = arith.constant 16 : index
    %c239 = arith.constant 239 : index
    %41 = vector.load %arg9[%c16_46, %c239] : memref<36x256xbf16, #tpu.memory_space<vmem>>, vector<4x17xbf16>
    tpu.vector_store %arg9[%c16_46, %c239], %39 {strides = array<i32>} : memref<36x256xbf16, #tpu.memory_space<vmem>>, vector<4x17xbf16>,
    %c0_47 = arith.constant 0 : index
    %c0_48 = arith.constant 0 : index
    %c18 = arith.constant 18 : index
    %42 = vector.load %arg2[%c0_47, %c0_48, %c18] : memref<1x4x256xbf16, #tpu.memory_space<vmem>>, vector<1x4x238xbf16>
    %43 = vector.shape_cast %42 : vector<1x4x238xbf16> to vector<4x238xbf16>
    %c0_49 = arith.constant 0 : index
    %c0_50 = arith.constant 0 : index
    %c0_51 = arith.constant 0 : index
    %c0_52 = arith.constant 0 : index
    %44 = vector.load %arg3[%c0_49, %c0_50, %c0_51, %c0_52] : memref<1x1x4x128xbf16, #tpu.memory_space<vmem>>, vector<1x1x4x18xbf16>
    %45 = vector.shape_cast %44 : vector<1x1x4x18xbf16> to vector<4x18xbf16>
    %c0_53 = arith.constant 0 : index
    %c0_54 = arith.constant 0 : index
    %46 = vector.load %arg5[%c0_53, %c0_54] : memref<1x256xbf16, #tpu.memory_space<vmem>>, vector<1x238xbf16>
    %47 = vector.broadcast %46 : vector<1x238xbf16> to vector<4x238xbf16>
    %48 = arith.mulf %43, %47 : vector<4x238xbf16>
    %c0_55 = arith.constant 0 : index
    %c238 = arith.constant 238 : index
    %49 = vector.load %arg5[%c0_55, %c238] : memref<1x256xbf16, #tpu.memory_space<vmem>>, vector<1x18xbf16>
    %50 = vector.broadcast %49 : vector<1x18xbf16> to vector<4x18xbf16>
    %51 = arith.mulf %45, %50 : vector<4x18xbf16>
    %c20 = arith.constant 20 : index
    %c0_56 = arith.constant 0 : index
    %52 = vector.load %arg9[%c20, %c0_56] : memref<36x256xbf16, #tpu.memory_space<vmem>>, vector<4x238xbf16>
    tpu.vector_store %arg9[%c20, %c0_56], %48 {strides = array<i32>} : memref<36x256xbf16, #tpu.memory_space<vmem>>, vector<4x238xbf16>,
    %c20_57 = arith.constant 20 : index
    %c238_58 = arith.constant 238 : index
    %53 = vector.load %arg9[%c20_57, %c238_58] : memref<36x256xbf16, #tpu.memory_space<vmem>>, vector<4x18xbf16>
    tpu.vector_store %arg9[%c20_57, %c238_58], %51 {strides = array<i32>} : memref<36x256xbf16, #tpu.memory_space<vmem>>, vector<4x18xbf16>,
    %c0_59 = arith.constant 0 : index
    %c0_60 = arith.constant 0 : index
    %c32 = arith.constant 32 : index
    %54 = vector.load %arg2[%c0_59, %c0_60, %c32] : memref<1x4x256xbf16, #tpu.memory_space<vmem>>, vector<1x4x224xbf16>
    %55 = vector.shape_cast %54 : vector<1x4x224xbf16> to vector<4x224xbf16>
    %c0_61 = arith.constant 0 : index
    %c0_62 = arith.constant 0 : index
    %c0_63 = arith.constant 0 : index
    %c0_64 = arith.constant 0 : index
    %56 = vector.load %arg3[%c0_61, %c0_62, %c0_63, %c0_64] : memref<1x1x4x128xbf16, #tpu.memory_space<vmem>>, vector<1x1x4x32xbf16>
    %57 = vector.shape_cast %56 : vector<1x1x4x32xbf16> to vector<4x32xbf16>
    %c0_65 = arith.constant 0 : index
    %c0_66 = arith.constant 0 : index
    %58 = vector.load %arg4[%c0_65, %c0_66] : memref<1x256xbf16, #tpu.memory_space<vmem>>, vector<1x224xbf16>
    %59 = vector.broadcast %58 : vector<1x224xbf16> to vector<4x224xbf16>
    %60 = arith.mulf %55, %59 : vector<4x224xbf16>
    %c0_67 = arith.constant 0 : index
    %c224 = arith.constant 224 : index
    %61 = vector.load %arg4[%c0_67, %c224] : memref<1x256xbf16, #tpu.memory_space<vmem>>, vector<1x32xbf16>
    %62 = vector.broadcast %61 : vector<1x32xbf16> to vector<4x32xbf16>
    %63 = arith.mulf %57, %62 : vector<4x32xbf16>
    %c24 = arith.constant 24 : index
    %c0_68 = arith.constant 0 : index
    %64 = vector.load %arg9[%c24, %c0_68] : memref<36x256xbf16, #tpu.memory_space<vmem>>, vector<4x224xbf16>
    tpu.vector_store %arg9[%c24, %c0_68], %60 {strides = array<i32>} : memref<36x256xbf16, #tpu.memory_space<vmem>>, vector<4x224xbf16>,
    %c24_69 = arith.constant 24 : index
    %c224_70 = arith.constant 224 : index
    %65 = vector.load %arg9[%c24_69, %c224_70] : memref<36x256xbf16, #tpu.memory_space<vmem>>, vector<4x32xbf16>
    tpu.vector_store %arg9[%c24_69, %c224_70], %63 {strides = array<i32>} : memref<36x256xbf16, #tpu.memory_space<vmem>>, vector<4x32xbf16>,
    %c0_71 = arith.constant 0 : index
    %c0_72 = arith.constant 0 : index
    %c33 = arith.constant 33 : index
    %66 = vector.load %arg2[%c0_71, %c0_72, %c33] : memref<1x4x256xbf16, #tpu.memory_space<vmem>>, vector<1x4x223xbf16>
    %67 = vector.shape_cast %66 : vector<1x4x223xbf16> to vector<4x223xbf16>
    %c0_73 = arith.constant 0 : index
    %c0_74 = arith.constant 0 : index
    %c0_75 = arith.constant 0 : index
    %c0_76 = arith.constant 0 : index
    %68 = vector.load %arg3[%c0_73, %c0_74, %c0_75, %c0_76] : memref<1x1x4x128xbf16, #tpu.memory_space<vmem>>, vector<1x1x4x33xbf16>
    %69 = vector.shape_cast %68 : vector<1x1x4x33xbf16> to vector<4x33xbf16>
    %c28 = arith.constant 28 : index
    %c0_77 = arith.constant 0 : index
    %70 = vector.load %arg9[%c28, %c0_77] : memref<36x256xbf16, #tpu.memory_space<vmem>>, vector<4x223xbf16>
    tpu.vector_store %arg9[%c28, %c0_77], %67 {strides = array<i32>} : memref<36x256xbf16, #tpu.memory_space<vmem>>, vector<4x223xbf16>,
    %c28_78 = arith.constant 28 : index
    %c223 = arith.constant 223 : index
    %71 = vector.load %arg9[%c28_78, %c223] : memref<36x256xbf16, #tpu.memory_space<vmem>>, vector<4x33xbf16>
    tpu.vector_store %arg9[%c28_78, %c223], %69 {strides = array<i32>} : memref<36x256xbf16, #tpu.memory_space<vmem>>, vector<4x33xbf16>,
    %c0_79 = arith.constant 0 : index
    %c0_80 = arith.constant 0 : index
    %c34 = arith.constant 34 : index
    %72 = vector.load %arg2[%c0_79, %c0_80, %c34] : memref<1x4x256xbf16, #tpu.memory_space<vmem>>, vector<1x4x222xbf16>
    %73 = vector.shape_cast %72 : vector<1x4x222xbf16> to vector<4x222xbf16>
    %c0_81 = arith.constant 0 : index
    %c0_82 = arith.constant 0 : index
    %c0_83 = arith.constant 0 : index
    %c0_84 = arith.constant 0 : index
    %74 = vector.load %arg3[%c0_81, %c0_82, %c0_83, %c0_84] : memref<1x1x4x128xbf16, #tpu.memory_space<vmem>>, vector<1x1x4x34xbf16>
    %75 = vector.shape_cast %74 : vector<1x1x4x34xbf16> to vector<4x34xbf16>
    %c0_85 = arith.constant 0 : index
    %c0_86 = arith.constant 0 : index
    %76 = vector.load %arg5[%c0_85, %c0_86] : memref<1x256xbf16, #tpu.memory_space<vmem>>, vector<1x222xbf16>
    %77 = vector.broadcast %76 : vector<1x222xbf16> to vector<4x222xbf16>
    %78 = arith.mulf %73, %77 : vector<4x222xbf16>
    %c0_87 = arith.constant 0 : index
    %c222 = arith.constant 222 : index
    %79 = vector.load %arg5[%c0_87, %c222] : memref<1x256xbf16, #tpu.memory_space<vmem>>, vector<1x34xbf16>
    %80 = vector.broadcast %79 : vector<1x34xbf16> to vector<4x34xbf16>
    %81 = arith.mulf %75, %80 : vector<4x34xbf16>
    %c32_88 = arith.constant 32 : index
    %c0_89 = arith.constant 0 : index
    %82 = vector.load %arg9[%c32_88, %c0_89] : memref<36x256xbf16, #tpu.memory_space<vmem>>, vector<4x222xbf16>
    tpu.vector_store %arg9[%c32_88, %c0_89], %78 {strides = array<i32>} : memref<36x256xbf16, #tpu.memory_space<vmem>>, vector<4x222xbf16>,
    %c32_90 = arith.constant 32 : index
    %c222_91 = arith.constant 222 : index
    %83 = vector.load %arg9[%c32_90, %c222_91] : memref<36x256xbf16, #tpu.memory_space<vmem>>, vector<4x34xbf16>
    tpu.vector_store %arg9[%c32_90, %c222_91], %81 {strides = array<i32>} : memref<36x256xbf16, #tpu.memory_space<vmem>>, vector<4x34xbf16>,
    %c0_92 = arith.constant 0 : index
    %c0_93 = arith.constant 0 : index
    %84 = vector.load %arg6[%c0_92, %c0_93] : memref<8x36xbf16, #tpu.memory_space<vmem>>, vector<8x36xbf16>
    %c0_94 = arith.constant 0 : index
    %c0_95 = arith.constant 0 : index
    %85 = vector.load %arg9[%c0_94, %c0_95] : memref<36x256xbf16, #tpu.memory_space<vmem>>, vector<36x256xbf16>
    %cst = arith.constant dense<0.000000e+00> : vector<8x256xf32>
    %86 = tpu.matmul %84, %85, %cst {dimension_numbers = #tpu.dot_dimension_numbers<[1], [0], [0], [1], [0, 0, 1, 1], [], []>} : vector<8x36xbf16>, vector<36x256xbf16>, vector<8x256xf32> -> vector<8x256xf32>
    %c0_96 = arith.constant 0 : index
    %c0_97 = arith.constant 0 : index
    %87 = vector.load %arg7[%c0_96, %c0_97] : memref<8x1xf32, #tpu.memory_space<vmem>>, vector<8x1xf32>
    %88 = vector.broadcast %87 : vector<8x1xf32> to vector<8x256xf32>
    %89 = arith.addf %86, %88 : vector<8x256xf32>
    %c0_98 = arith.constant 0 : index
    %c0_99 = arith.constant 0 : index
    %c0_100 = arith.constant 0 : index
    %90 = vector.load %arg8[%c0_98, %c0_99, %c0_100] : memref<1x8x256xf32, #tpu.memory_space<vmem>>, vector<1x8x256xf32>
    %91 = vector.shape_cast %90 : vector<1x8x256xf32> to vector<8x256xf32>
    %92 = vector.shape_cast %89 : vector<8x256xf32> to vector<1x8x256xf32>
    tpu.vector_store %arg8[%c0_98, %c0_99, %c0_100], %92 {strides = array<i32>} : memref<1x8x256xf32, #tpu.memory_space<vmem>>, vector<1x8x256xf32>,
    return
  }
  func.func @transform_0(%arg0: i32, %arg1: i32) -> (i32, i32, i32) {
    %c0_i32 = arith.constant 0 : i32
    %c0_i32_0 = arith.constant 0 : i32
    return %arg0, %c0_i32, %arg1 : i32, i32, i32
  }
  func.func @transform_1(%arg0: i32, %arg1: i32) -> (i32, i32, i32, i32) {
    %c0_i32 = arith.constant 0 : i32
    %c0_i32_0 = arith.constant 0 : i32
    %c0_i32_1 = arith.constant 0 : i32
    return %arg0, %arg1, %c0_i32, %c0_i32_0 : i32, i32, i32, i32
  }
  func.func @transform_2(%arg0: i32, %arg1: i32) -> (i32, i32) {
    %c0_i32 = arith.constant 0 : i32
    %c0_i32_0 = arith.constant 0 : i32
    %c0_i32_1 = arith.constant 0 : i32
    return %c0_i32, %c0_i32_0 : i32, i32
  }
  func.func @transform_3(%arg0: i32, %arg1: i32) -> (i32, i32) {
    %c0_i32 = arith.constant 0 : i32
    %c0_i32_0 = arith.constant 0 : i32
    %c0_i32_1 = arith.constant 0 : i32
    return %c0_i32, %c0_i32_0 : i32, i32
  }
  func.func @transform_4(%arg0: i32, %arg1: i32) -> (i32, i32) {
    %c0_i32 = arith.constant 0 : i32
    %c0_i32_0 = arith.constant 0 : i32
    %c0_i32_1 = arith.constant 0 : i32
    return %c0_i32, %c0_i32_0 : i32, i32
  }
  func.func @transform_5(%arg0: i32, %arg1: i32) -> (i32, i32) {
    %c0_i32 = arith.constant 0 : i32
    %c0_i32_0 = arith.constant 0 : i32
    %c0_i32_1 = arith.constant 0 : i32
    return %c0_i32, %c0_i32_0 : i32, i32
  }
  func.func @transform_6(%arg0: i32, %arg1: i32) -> (i32, i32, i32) {
    %c0_i32 = arith.constant 0 : i32
    %c0_i32_0 = arith.constant 0 : i32
    return %arg0, %c0_i32, %arg1 : i32, i32, i32
  }
}

</mosaic_0001>

<llo_original>
// kernel: layer_wrapper_2d.1
$region0: #{layer_wrapper_2d.1}
  #allocation0 [shape = 'u32[]', space=smem, size = 0x4, offset = 0x4, fixed_abs, tag = 'smem constant byte address 0x4 - core index']
  #allocation1 [shape = 'u32[144,128]{1,0:T(1,128)}', space=vmem, size = 0x12000, scoped, tag = 'internal scratch']
  #allocation2 [shape = 'bf16[36,256]{1,0:T(8,128)(2,1)}', space=vmem, size = 0x5000, scoped, tag = 'scratch operand']
  %s0 = inlined_call_operand.vmem [shape: bf16[2,4,640], index: 0, kind: input, shape index: {}]
  %s1 = inlined_call_operand.vmem [shape: bf16[2,2,4,128], index: 1, kind: input, shape index: {}]
  %s2 = inlined_call_operand.vmem [shape: bf16[1,256], index: 2, kind: input, shape index: {}]
  %s3 = inlined_call_operand.vmem [shape: bf16[1,256], index: 3, kind: input, shape index: {}]
  %s4 = inlined_call_operand.vmem [shape: bf16[8,36], index: 4, kind: input, shape index: {}]
  %s5 = inlined_call_operand.vmem [shape: f32[8,1], index: 5, kind: input, shape index: {}]
  %s6 = inlined_call_operand.vmem [shape: f32[2,8,256], index: 6, kind: output, shape index: {}]
  %s7 = sld [smem:[#allocation0]]
  $region57: #{layer_wrapper_2d.1} parent=0
    _
  %s9 = ssub.s32 1, %s7
  %s10 = scalar_select 0, %s9, %s7
  loop: start=0, step=1, limit=4
  $region2: #{layer_wrapper_2d.1} parent=0 // loop_pre_header
    _
  $region3: #{layer_wrapper_2d.1} parent=0 // loop_header
    %s12 = sphi 0, %s16
    %p13 = scmp.ge.s32.totalorder %s12, 4
    %s19 = sphi 0, %s31
    %s20 = sphi 0, %s27
    %s21 = sphi 0, %s19
    %s22 = sphi 0, %s20
    %s23 = sphi 0, %s21
    %s24 = sphi 0, %s22
    %s36 = sphi 0, %s38
    %s39 = sphi 0, %s36
    %s40 = sphi 0, %s39
    %s56 = sphi 0, %s40
    %s64 = sphi 0, %s66
    %s67 = sphi 0, %s64
    %s68 = sphi 0, %s67
    %s84 = sphi 0, %s68
    %s88 = sphi 0, %s88
    %s90 = sphi 0, %s88
    %s91 = sphi 0, %s90
    %s105 = sphi 0, %s91
    %s109 = sphi 0, %s109
    %s111 = sphi 0, %s109
    %s112 = sphi 0, %s111
    %s126 = sphi 0, %s112
    %s130 = sphi 0, %s130
    %s132 = sphi 0, %s130
    %s133 = sphi 0, %s132
    %s147 = sphi 0, %s133
    %s151 = sphi 0, %s151
    %s153 = sphi 0, %s151
    %s154 = sphi 0, %s153
    %s168 = sphi 0, %s154
    %s176 = sphi 0, %s178
    %s179 = sphi 0, %s176
    %s180 = sphi 0, %s179
    %s196 = sphi 0, %s180
  $region4: #{layer_wrapper_2d.1} parent=0 // loop_header_branch
    %15 = sbr.rel (%p13) target = $region8
  $region5: #{layer_wrapper_2d.1} parent=0 // loop_body
    %s17 = ssub.s32 %s12, 1
    %s18 = ssub.s32 %s12, 2
    %s25 = sadd.s32 1, %s20
    %p26 = scmp.ge.s32.totalorder %s25, 1
    %s27 = scalar_select %p26, 0, %s25
    %s28 = sadd.s32 1, %s19
    %s29 = scalar_select %p26, %s28, %s19
    %p30 = scmp.ge.s32.totalorder %s29, 2
    %s31 = scalar_select %p30, 0, %s29
    %s32 = ssub.s32 %s19, %s31
    %s33 = ssub.s32 %s20, %s27
    %s34 = sor.u32 %s32, %s33
    %p35 = scmp.eq.s32.totalorder %s34, 0
    %s37 = sadd.s32 %s36, 1
    %s38 = scalar_select %p35, %s36, %s37
    %p41 = pneg %p35
    %p42 = scmp.eq.s32.totalorder %s12, 1
    %p43 = por %p41, %p42
    %p44 = scmp.ne.s32.totalorder %s36, %s39
    %p45 = scmp.eq.s32.totalorder %s12, 0
    %p46 = por %p44, %p45
    %p47 = scmp.ne.s32.totalorder %s36, %s39
    %p48 = scmp.eq.s32.totalorder %s17, 1
    %p49 = por %p47, %p48
    %p50 = scmp.ne.s32.totalorder %s39, %s40
    %p51 = scmp.eq.s32.totalorder %s17, 0
    %p52 = por %p50, %p51
    %p53 = scmp.ne.s32.totalorder %s39, %s40
    %p54 = scmp.eq.s32.totalorder %s18, 1
    %p55 = por %p53, %p54
    %p57 = scmp.ne.s32.totalorder %s40, %s56
    %p58 = scmp.eq.s32.totalorder %s18, 0
    %p59 = por %p57, %p58
    %s60 = ssub.s32 %s19, %s31
    %s61 = ssub.s32 %s20, %s27
    %s62 = sor.u32 %s60, %s61
    %p63 = scmp.eq.s32.totalorder %s62, 0
    %s65 = sadd.s32 %s64, 1
    %s66 = scalar_select %p63, %s64, %s65
    %p69 = pneg %p63
    %p70 = scmp.eq.s32.totalorder %s12, 1
    %p71 = por %p69, %p70
    %p72 = scmp.ne.s32.totalorder %s64, %s67
    %p73 = scmp.eq.s32.totalorder %s12, 0
    %p74 = por %p72, %p73
    %p75 = scmp.ne.s32.totalorder %s64, %s67
    %p76 = scmp.eq.s32.totalorder %s17, 1
    %p77 = por %p75, %p76
    %p78 = scmp.ne.s32.totalorder %s67, %s68
    %p79 = scmp.eq.s32.totalorder %s17, 0
    %p80 = por %p78, %p79
    %p81 = scmp.ne.s32.totalorder %s67, %s68
    %p82 = scmp.eq.s32.totalorder %s18, 1
    %p83 = por %p81, %p82
    %p85 = scmp.ne.s32.totalorder %s68, %s84
    %p86 = scmp.eq.s32.totalorder %s18, 0
    %p87 = por %p85, %p86
    %s89 = sadd.s32 %s88, 1
    %p92 = scmp.eq.s32.totalorder %s12, 1
    %p93 = scmp.ne.s32.totalorder %s88, %s90
    %p94 = scmp.eq.s32.totalorder %s12, 0
    %p95 = por %p93, %p94
    %p96 = scmp.ne.s32.totalorder %s88, %s90
    %p97 = scmp.eq.s32.totalorder %s17, 1
    %p98 = por %p96, %p97
    %p99 = scmp.ne.s32.totalorder %s90, %s91
    %p100 = scmp.eq.s32.totalorder %s17, 0
    %p101 = por %p99, %p100
    %p102 = scmp.ne.s32.totalorder %s90, %s91
    %p103 = scmp.eq.s32.totalorder %s18, 1
    %p104 = por %p102, %p103
    %p106 = scmp.ne.s32.totalorder %s91, %s105
    %p107 = scmp.eq.s32.totalorder %s18, 0
    %p108 = por %p106, %p107
    %s110 = sadd.s32 %s109, 1
    %p113 = scmp.eq.s32.totalorder %s12, 1
    %p114 = scmp.ne.s32.totalorder %s109, %s111
    %p115 = scmp.eq.s32.totalorder %s12, 0
    %p116 = por %p114, %p115
    %p117 = scmp.ne.s32.totalorder %s109, %s111
    %p118 = scmp.eq.s32.totalorder %s17, 1
    %p119 = por %p117, %p118
    %p120 = scmp.ne.s32.totalorder %s111, %s112
    %p121 = scmp.eq.s32.totalorder %s17, 0
    %p122 = por %p120, %p121
    %p123 = scmp.ne.s32.totalorder %s111, %s112
    %p124 = scmp.eq.s32.totalorder %s18, 1
    %p125 = por %p123, %p124
    %p127 = scmp.ne.s32.totalorder %s112, %s126
    %p128 = scmp.eq.s32.totalorder %s18, 0
    %p129 = por %p127, %p128
    %s131 = sadd.s32 %s130, 1
    %p134 = scmp.eq.s32.totalorder %s12, 1
    %p135 = scmp.ne.s32.totalorder %s130, %s132
    %p136 = scmp.eq.s32.totalorder %s12, 0
    %p137 = por %p135, %p136
    %p138 = scmp.ne.s32.totalorder %s130, %s132
    %p139 = scmp.eq.s32.totalorder %s17, 1
    %p140 = por %p138, %p139
    %p141 = scmp.ne.s32.totalorder %s132, %s133
    %p142 = scmp.eq.s32.totalorder %s17, 0
    %p143 = por %p141, %p142
    %p144 = scmp.ne.s32.totalorder %s132, %s133
    %p145 = scmp.eq.s32.totalorder %s18, 1
    %p146 = por %p144, %p145
    %p148 = scmp.ne.s32.totalorder %s133, %s147
    %p149 = scmp.eq.s32.totalorder %s18, 0
    %p150 = por %p148, %p149
    %s152 = sadd.s32 %s151, 1
    %p155 = scmp.eq.s32.totalorder %s12, 1
    %p156 = scmp.ne.s32.totalorder %s151, %s153
    %p157 = scmp.eq.s32.totalorder %s12, 0
    %p158 = por %p156, %p157
    %p159 = scmp.ne.s32.totalorder %s151, %s153
    %p160 = scmp.eq.s32.totalorder %s17, 1
    %p161 = por %p159, %p160
    %p162 = scmp.ne.s32.totalorder %s153, %s154
    %p163 = scmp.eq.s32.totalorder %s17, 0
    %p164 = por %p162, %p163
    %p165 = scmp.ne.s32.totalorder %s153, %s154
    %p166 = scmp.eq.s32.totalorder %s18, 1
    %p167 = por %p165, %p166
    %p169 = scmp.ne.s32.totalorder %s154, %s168
    %p170 = scmp.eq.s32.totalorder %s18, 0
    %p171 = por %p169, %p170
    %s172 = ssub.s32 %s19, %s31
    %s173 = ssub.s32 %s20, %s27
    %s174 = sor.u32 %s172, %s173
    %p175 = scmp.eq.s32.totalorder %s174, 0
    %s177 = sadd.s32 %s176, 1
    %s178 = scalar_select %p175, %s176, %s177
    %p181 = pneg %p175
    %p182 = scmp.eq.s32.totalorder %s12, 1
    %p183 = por %p181, %p182
    %p184 = scmp.ne.s32.totalorder %s176, %s179
    %p185 = scmp.eq.s32.totalorder %s12, 0
    %p186 = por %p184, %p185
    %p187 = scmp.ne.s32.totalorder %s176, %s179
    %p188 = scmp.eq.s32.totalorder %s17, 1
    %p189 = por %p187, %p188
    %p190 = scmp.ne.s32.totalorder %s179, %s180
    %p191 = scmp.eq.s32.totalorder %s17, 0
    %p192 = por %p190, %p191
    %p193 = scmp.ne.s32.totalorder %s179, %s180
    %p194 = scmp.eq.s32.totalorder %s18, 1
    %p195 = por %p193, %p194
    %p197 = scmp.ne.s32.totalorder %s180, %s196
    %p198 = scmp.eq.s32.totalorder %s18, 0
    %p199 = por %p197, %p198
    %p200 = scmp.le.s32.totalorder 1, %s12
    %p201 = scmp.lt.s32.totalorder %s12, 3
    %p202 = pnand %p200, %p201
    %p203 = pneg %p202
    // Predicated region
    $region9: #{layer_wrapper_2d.1} parent=5 // pred_check
      _
    $region10: #{layer_wrapper_2d.1} parent=5 // pred_check_branch
      %205 = sbr.rel (%p202) target = $region12
    $region11: #{layer_wrapper_2d.1} parent=5 // pred_region
      %s206 = ssub.s32 %s12, 1
      // Predicated region
      $region13: #{layer_wrapper_2d.1} parent=11 // pred_check
        %p207 = pneg %p101
      $region14: #{layer_wrapper_2d.1} parent=11 // pred_check_branch
        %209 = sbr.rel (%p207) target = $region16
      $region15: #{layer_wrapper_2d.1} parent=11 // pred_region
        _
      $region16: #{layer_wrapper_2d.1} parent=11 // pred_fallthru
        _
      // Predicated region
      $region17: #{layer_wrapper_2d.1} parent=11 // pred_check
        %p210 = pneg %p122
      $region18: #{layer_wrapper_2d.1} parent=11 // pred_check_branch
        %212 = sbr.rel (%p210) target = $region20
      $region19: #{layer_wrapper_2d.1} parent=11 // pred_region
        _
      $region20: #{layer_wrapper_2d.1} parent=11 // pred_fallthru
        _
      // Predicated region
      $region21: #{layer_wrapper_2d.1} parent=11 // pred_check
        %p213 = pneg %p143
      $region22: #{layer_wrapper_2d.1} parent=11 // pred_check_branch
        %215 = sbr.rel (%p213) target = $region24
      $region23: #{layer_wrapper_2d.1} parent=11 // pred_region
        _
      $region24: #{layer_wrapper_2d.1} parent=11 // pred_fallthru
        _
      // Predicated region
      $region25: #{layer_wrapper_2d.1} parent=11 // pred_check
        %p216 = pneg %p164
      $region26: #{layer_wrapper_2d.1} parent=11 // pred_check_branch
        %218 = sbr.rel (%p216) target = $region28
      $region27: #{layer_wrapper_2d.1} parent=11 // pred_region
        _
      $region28: #{layer_wrapper_2d.1} parent=11 // pred_fallthru
        _
    $region12: #{layer_wrapper_2d.1} parent=5 // pred_fallthru
      _
    %p219 = scmp.lt.s32.totalorder %s12, 2
    // Predicated region
    $region29: #{layer_wrapper_2d.1} parent=5 // pred_check
      %p220 = pneg %p219
    $region30: #{layer_wrapper_2d.1} parent=5 // pred_check_branch
      %222 = sbr.rel (%p220) target = $region32
    $region31: #{layer_wrapper_2d.1} parent=5 // pred_region
      // Predicated region
      $region33: #{layer_wrapper_2d.1} parent=31 // pred_check
        %p223 = pneg %p46
      $region34: #{layer_wrapper_2d.1} parent=31 // pred_check_branch
        %225 = sbr.rel (%p223) target = $region36
      $region35: #{layer_wrapper_2d.1} parent=31 // pred_region
        %s226 = smul.u32 2, %s20
        %s227 = ssub.s32 5, %s226
        %p228 = scmp.lt.s32.totalorder %s227, 2
        %s229 = scalar_select %p228, %s227, 2
        %s230 = smul.u32 32, %s229
        %p231 = scmp.lt.s32.totalorder %s19, 1
        %s232 = scalar_select %p231, %s19, 1
        %p233 = scmp.lt.s32.totalorder %s226, 4
        %s234 = scalar_select %p233, %s226, 4
        %s235 = smul.addr %s232, 5
        %s236 = sadd.s32 %s234, %s235
        %s237 = smul.addr %s236, 2
        %s238 = scalar_lea.vmem %s0, %s237
        %s239 = smul.u32 2, %s20
        %s240 = ssub.s32 5, %s239
        %p241 = scmp.lt.s32.totalorder %s240, 2
        %s242 = scalar_select %p241, %s240, 2
        %s243 = smul.u32 32, %s242
      $region36: #{layer_wrapper_2d.1} parent=31 // pred_fallthru
        _
      // Predicated region
      $region37: #{layer_wrapper_2d.1} parent=31 // pred_check
        %p244 = pneg %p74
      $region38: #{layer_wrapper_2d.1} parent=31 // pred_check_branch
        %246 = sbr.rel (%p244) target = $region40
      $region39: #{layer_wrapper_2d.1} parent=31 // pred_region
        %p247 = scmp.lt.s32.totalorder %s19, 1
        %s248 = scalar_select %p247, %s19, 1
        %p249 = scmp.lt.s32.totalorder %s20, 1
        %s250 = scalar_select %p249, %s20, 1
        %s251 = smul.addr %s248, 2
        %s252 = sadd.s32 %s250, %s251
        %s253 = smul.addr %s252, 2
        %s254 = scalar_lea.vmem %s1, %s253
      $region40: #{layer_wrapper_2d.1} parent=31 // pred_fallthru
        _
    $region32: #{layer_wrapper_2d.1} parent=5 // pred_fallthru
      _
    %p255 = scmp.le.s32.totalorder 1, %s12
    %p256 = scmp.lt.s32.totalorder %s12, 3
    %p257 = pnand %p255, %p256
    %p258 = pneg %p257
    // Predicated region
    $region41: #{layer_wrapper_2d.1} parent=5 // pred_check
      _
    $region42: #{layer_wrapper_2d.1} parent=5 // pred_check_branch
      %260 = sbr.rel (%p257) target = $region44
    $region43: #{layer_wrapper_2d.1} parent=5 // pred_region
      %s261 = ssub.s32 %s12, 1
      %s262 = smul.u32 2, %s22
      %s263 = ssub.s32 5, %s262
      %p264 = scmp.lt.s32.totalorder %s263, 2
      %s265 = scalar_select %p264, %s263, 2
      %s266 = smul.u32 32, %s265
      %p267 = scmp.lt.s32.totalorder %s21, 1
      %s268 = scalar_select %p267, %s21, 1
      %p269 = scmp.lt.s32.totalorder %s262, 4
      %s270 = scalar_select %p269, %s262, 4
      %s271 = smul.addr %s268, 5
      %s272 = sadd.s32 %s270, %s271
      %s273 = smul.addr %s272, 2
      %s274 = scalar_lea.vmem %s0, %s273
      %p275 = pneg %p52
      %p276 = pneg %p49
      %p277 = scmp.lt.s32.totalorder %s21, 1
      %s278 = scalar_select %p277, %s21, 1
      %p279 = scmp.lt.s32.totalorder %s22, 1
      %s280 = scalar_select %p279, %s22, 1
      %s281 = smul.addr %s278, 2
      %s282 = sadd.s32 %s280, %s281
      %s283 = smul.addr %s282, 2
      %s284 = scalar_lea.vmem %s1, %s283
      %p285 = pneg %p80
      %p286 = pneg %p77
      %p287 = pneg %p101
      %p288 = pneg %p98
      %p289 = pneg %p122
      %p290 = pneg %p119
      %p291 = pneg %p143
      %p292 = pneg %p140
      %p293 = pneg %p164
      %p294 = pneg %p161
      %p295 = pneg %p192
      %p296 = pneg %p189
      %s297 = smul.u32 2, %s22
      %p298 = scmp.lt.s32.totalorder %s21, 1
      %s299 = scalar_select %p298, %s21, 1
      %p300 = scmp.lt.s32.totalorder %s297, 1
      %s301 = scalar_select %p300, %s297, 1
      %s302 = smul.addr %s299, 2
      %s303 = sadd.s32 %s301, %s302
      %s304 = smul.addr %s303, 8
      %s305 = scalar_lea.vmem %s6, %s304
      %s306 = smul.u32 2, %s22
      %s307 = ssub.s32 5, %s306
      %p308 = scmp.lt.s32.totalorder %s307, 2
      %s309 = scalar_select %p308, %s307, 2
      %s310 = smul.u32 32, %s309
      %p311 = scmp.lt.s32.totalorder %s21, 1
      %s312 = scalar_select %p311, %s21, 1
      %p313 = scmp.lt.s32.totalorder %s306, 4
      %s314 = scalar_select %p313, %s306, 4
      %s315 = smul.addr %s312, 5
      %s316 = sadd.s32 %s314, %s315
      %s317 = smul.addr %s316, 2
      %s318 = scalar_lea.vmem %s0, %s317
      %s319 = smul.u32 2, %s22
      %s320 = ssub.s32 5, %s319
      %p321 = scmp.lt.s32.totalorder %s320, 2
      %s322 = scalar_select %p321, %s320, 2
      %s323 = smul.u32 32, %s322
      %p324 = scmp.lt.s32.totalorder %s21, 1
      %s325 = scalar_select %p324, %s21, 1
      %p326 = scmp.lt.s32.totalorder %s22, 1
      %s327 = scalar_select %p326, %s22, 1
      %s328 = smul.addr %s325, 2
      %s329 = sadd.s32 %s327, %s328
      %s330 = smul.addr %s329, 2
      %s331 = scalar_lea.vmem %s1, %s330
      %s332 = smul.u32 2, %s22
      %p333 = scmp.lt.s32.totalorder %s21, 1
      %s334 = scalar_select %p333, %s21, 1
      %p335 = scmp.lt.s32.totalorder %s332, 1
      %s336 = scalar_select %p335, %s332, 1
      %s337 = smul.addr %s334, 2
      %s338 = sadd.s32 %s336, %s337
      %s339 = smul.addr %s338, 8
      %s340 = scalar_lea.vmem %s6, %s339
      %s341 = smul.u32 2, %s22
      %v343 = vld [vmem:[%s318] sm:$0xf]
      %v344 = vld [vmem:[%s2] sm:$0x3]
      %v347 = vunpack.c.l.s4 1966171168
      %v348 = vunpack.c.0.s8 %v347
      %v349 = vlaneseq
      %v350 = vshrl.u32 %v349, 7
      %v351 = vsub.s32 %v348, %v350
      %v352 = vrot.slane %v344, %v351
      %v353 = vcombine.high %v352, %v352
      %v355 = vunpack.c.l.s4 1966171168
      %v356 = vunpack.c.0.s8 %v355
      %v357 = vlaneseq
      %v358 = vshrl.u32 %v357, 7
      %v359 = vsub.s32 %v356, %v358
      %v360 = vrot.slane %v352, %v359
      %v362 = vunpack.c.l.s4 1966171168
      %v363 = vunpack.c.0.s8 %v362
      %v364 = vlaneseq
      %v365 = vshrl.u32 %v364, 7
      %v366 = vsub.s32 %v363, %v365
      %v367 = vrot.slane %v353, %v366
      %v369 = vpack.i.b16 %v360, %v360
      %v371 = vlaneseq
      %v372 = vshrl.u32 %v371, 7
      %v373 = vsub.s32 0, %v372
      %v374 = vrot.slane %v369, %v373
      %v376 = vpack.i.b16 %v367, %v367
      %v378 = vlaneseq
      %v379 = vshrl.u32 %v378, 7
      %v380 = vsub.s32 0, %v379
      %v381 = vrot.slane %v376, %v380
      %v384 = vcombine.low %v374, %v381
      %v386 = vunpack.c.l.s4 1983009808
      %v387 = vunpack.c.0.s8 %v386
      %v388 = vlaneseq
      %v389 = vshrl.u32 %v388, 7
      %v390 = vsub.s32 %v387, %v389
      %v391 = vrot.slane %v384, %v390
      %v393 = vmul.bf16 %v343, %v391
      %v396 = vunpack.c.l.s4 1983009808
      %v397 = vunpack.c.0.s8 %v396
      %v398 = vlaneseq
      %v399 = vshrl.u32 %v398, 7
      %v400 = vsub.s32 %v397, %v399
      %v401 = vrot.slane %v393, %v400
      %403 = vst [vmem:[#allocation2] sm:$0x33] %v401
      %v404 = vld [vmem:[%s318] sm:$0xf]
      %v405 = vld [vmem:[%s331] sm:$0x3]
      %v407 = vcombine.low %v404, %v404
      %v409 = vunpack.c.l.s4 1983009808
      %v410 = vunpack.c.0.s8 %v409
      %v411 = vlaneseq
      %v412 = vshrl.u32 %v411, 7
      %v413 = vsub.s32 %v410, %v412
      %v414 = vrot.slane %v407, %v413
      %415 = vrot.lane.b32.xlu0 %v414, 127
      %v416 = vpop.permute.xlu0 %415
      %v417 = vrot.slane %v416, 4
      %vm418 = vcmask 1039360
      %v419 = vsel %vm418, %v416, %v417
      %vm421 = vcmask 1043458
      %vm422 = vcmask 1039366
      %vm423 = vmor %vm422, %vm421
      %424 = vst.msk [vmem:[#allocation2] sm:$0xcc] %vm423, %v419
      %v426 = vcombine.low %v405, %v405
      %v428 = vunpack.c.l.s4 1983009808
      %v429 = vunpack.c.0.s8 %v428
      %v430 = vlaneseq
      %v431 = vshrl.u32 %v430, 7
      %v432 = vsub.s32 %v429, %v431
      %v433 = vrot.slane %v426, %v432
      %434 = vrot.lane.b32.xlu0 %v433, 127
      %v435 = vpop.permute.xlu0 %434
      %vm437 = vcmask 1044474
      %438 = vst.msk [vmem:[#allocation2 + $0x4] sm:$0xc] %vm437, %v435
      %v439 = vld [vmem:[%s318] sm:$0xf]
      %v440 = vld [vmem:[%s331] sm:$0x3]
      %v441 = vld [vmem:[%s3] sm:$0x3]
      %v444 = vunpack.c.l.s4 1966171168
      %v445 = vunpack.c.0.s8 %v444
      %v446 = vlaneseq
      %v447 = vshrl.u32 %v446, 7
      %v448 = vsub.s32 %v445, %v447
      %v449 = vrot.slane %v441, %v448
      %v450 = vcombine.high %v449, %v449
      %v452 = vunpack.c.l.s4 1966171168
      %v453 = vunpack.c.0.s8 %v452
      %v454 = vlaneseq
      %v455 = vshrl.u32 %v454, 7
      %v456 = vsub.s32 %v453, %v455
      %v457 = vrot.slane %v449, %v456
      %v459 = vunpack.c.l.s4 1966171168
      %v460 = vunpack.c.0.s8 %v459
      %v461 = vlaneseq
      %v462 = vshrl.u32 %v461, 7
      %v463 = vsub.s32 %v460, %v462
      %v464 = vrot.slane %v450, %v463
      %v466 = vpack.i.b16 %v457, %v457
      %v468 = vlaneseq
      %v469 = vshrl.u32 %v468, 7
      %v470 = vsub.s32 0, %v469
      %v471 = vrot.slane %v466, %v470
      %v473 = vpack.i.b16 %v464, %v464
      %v475 = vlaneseq
      %v476 = vshrl.u32 %v475, 7
      %v477 = vsub.s32 0, %v476
      %v478 = vrot.slane %v473, %v477
      %v481 = vcombine.low %v471, %v478
      %v483 = vunpack.c.l.s4 1983009808
      %v484 = vunpack.c.0.s8 %v483
      %v485 = vlaneseq
      %v486 = vshrl.u32 %v485, 7
      %v487 = vsub.s32 %v484, %v486
      %v488 = vrot.slane %v481, %v487
      %489 = vrot.lane.b32.xlu0 %v488, 2
      %v490 = vpop.permute.xlu0 %489
      %v491 = vrot.slane %v490, 6
      %vm492 = vcmask 15360
      %v493 = vsel %vm492, %v491, %v490
      %v495 = vmul.bf16 %v439, %v493
      %v496 = vld [vmem:[%s3 + $0x1] sm:$0x1]
      %v498 = vpack.i.b16 %v496, %v496
      %v500 = vlaneseq
      %v501 = vshrl.u32 %v500, 7
      %v502 = vsub.s32 0, %v501
      %v503 = vrot.slane %v498, %v502
      %v506 = vunpack.c.l.s4 1983009808
      %v507 = vunpack.c.0.s8 %v506
      %v508 = vlaneseq
      %v509 = vshrl.u32 %v508, 7
      %v510 = vsub.s32 %v507, %v509
      %v511 = vrot.slane %v503, %v510
      %512 = vrot.lane.b32.xlu0 %v511, 2
      %v513 = vpop.permute.xlu0 %512
      %v515 = vmul.bf16 %v440, %v513
      %v518 = vunpack.c.l.s4 1983009808
      %v519 = vunpack.c.0.s8 %v518
      %v520 = vlaneseq
      %v521 = vshrl.u32 %v520, 7
      %v522 = vsub.s32 %v519, %v521
      %v523 = vrot.slane %v495, %v522
      %524 = vrot.lane.b32.xlu0 %v523, 126
      %v525 = vpop.permute.xlu0 %524
      %v526 = vrot.slane %v525, 4
      %vm527 = vcmask 1031168
      %v528 = vsel %vm527, %v525, %v526
      %vm530 = vcmask 1041408
      %vm531 = vcmask 1029124
      %vm532 = vmor %vm531, %vm530
      %533 = vst.msk [vmem:[#allocation2 + $0x8] sm:$0x33] %vm532, %v528
      %v536 = vunpack.c.l.s4 1983009808
      %v537 = vunpack.c.0.s8 %v536
      %v538 = vlaneseq
      %v539 = vshrl.u32 %v538, 7
      %v540 = vsub.s32 %v537, %v539
      %v541 = vrot.slane %v515, %v540
      %542 = vrot.lane.b32.xlu0 %v541, 126
      %v543 = vpop.permute.xlu0 %542
      %vm545 = vcmask 1042416
      %546 = vst.msk [vmem:[#allocation2 + $0xc] sm:$0x3] %vm545, %v543
      %v547 = vld [vmem:[%s318] sm:$0xf]
      %v548 = vld [vmem:[%s331] sm:$0x3]
      %v549 = vld [vmem:[%s2] sm:$0x3]
      %v552 = vunpack.c.l.s4 1966171168
      %v553 = vunpack.c.0.s8 %v552
      %v554 = vlaneseq
      %v555 = vshrl.u32 %v554, 7
      %v556 = vsub.s32 %v553, %v555
      %v557 = vrot.slane %v549, %v556
      %v558 = vcombine.high %v557, %v557
      %v560 = vunpack.c.l.s4 1966171168
      %v561 = vunpack.c.0.s8 %v560
      %v562 = vlaneseq
      %v563 = vshrl.u32 %v562, 7
      %v564 = vsub.s32 %v561, %v563
      %v565 = vrot.slane %v557, %v564
      %v567 = vunpack.c.l.s4 1966171168
      %v568 = vunpack.c.0.s8 %v567
      %v569 = vlaneseq
      %v570 = vshrl.u32 %v569, 7
      %v571 = vsub.s32 %v568, %v570
      %v572 = vrot.slane %v558, %v571
      %v574 = vpack.i.b16 %v565, %v565
      %v576 = vlaneseq
      %v577 = vshrl.u32 %v576, 7
      %v578 = vsub.s32 0, %v577
      %v579 = vrot.slane %v574, %v578
      %v581 = vpack.i.b16 %v572, %v572
      %v583 = vlaneseq
      %v584 = vshrl.u32 %v583, 7
      %v585 = vsub.s32 0, %v584
      %v586 = vrot.slane %v581, %v585
      %v589 = vcombine.low %v579, %v586
      %v591 = vunpack.c.l.s4 1983009808
      %v592 = vunpack.c.0.s8 %v591
      %v593 = vlaneseq
      %v594 = vshrl.u32 %v593, 7
      %v595 = vsub.s32 %v592, %v594
      %v596 = vrot.slane %v589, %v595
      %597 = vrot.lane.b32.xlu0 %v596, 16
      %v598 = vpop.permute.xlu0 %597
      %v599 = vrot.slane %v598, 6
      %vm600 = vcmask 130048
      %v601 = vsel %vm600, %v599, %v598
      %v603 = vmul.bf16 %v547, %v601
      %v604 = vld [vmem:[%s2 + $0x1] sm:$0x1]
      %v606 = vpack.i.b16 %v604, %v604
      %v608 = vlaneseq
      %v609 = vshrl.u32 %v608, 7
      %v610 = vsub.s32 0, %v609
      %v611 = vrot.slane %v606, %v610
      %v614 = vunpack.c.l.s4 1983009808
      %v615 = vunpack.c.0.s8 %v614
      %v616 = vlaneseq
      %v617 = vshrl.u32 %v616, 7
      %v618 = vsub.s32 %v615, %v617
      %v619 = vrot.slane %v611, %v618
      %620 = vrot.lane.b32.xlu0 %v619, 16
      %v621 = vpop.permute.xlu0 %620
      %v623 = vmul.bf16 %v548, %v621
      %v625 = vcombine.low %v603, %v603
      %v627 = vunpack.c.l.s4 1983009808
      %v628 = vunpack.c.0.s8 %v627
      %v629 = vlaneseq
      %v630 = vshrl.u32 %v629, 7
      %v631 = vsub.s32 %v628, %v630
      %v632 = vrot.slane %v625, %v631
      %633 = vrot.lane.b32.xlu0 %v632, 112
      %v634 = vpop.permute.xlu0 %633
      %v635 = vrot.slane %v634, 4
      %vm636 = vcmask 916480
      %v637 = vsel %vm636, %v634, %v635
      %vm639 = vcmask 916486
      %vm640 = vmor %vm639, %vm421
      %641 = vst.msk [vmem:[#allocation2 + $0x8] sm:$0xcc] %vm640, %v637
      %v643 = vcombine.low %v623, %v623
      %v645 = vunpack.c.l.s4 1983009808
      %v646 = vunpack.c.0.s8 %v645
      %v647 = vlaneseq
      %v648 = vshrl.u32 %v647, 7
      %v649 = vsub.s32 %v646, %v648
      %v650 = vrot.slane %v643, %v649
      %651 = vrot.lane.b32.xlu0 %v650, 112
      %v652 = vpop.permute.xlu0 %651
      %vm654 = vcmask 1044354
      %655 = vst.msk [vmem:[#allocation2 + $0xc] sm:$0xc] %vm654, %v652
      %v656 = vld [vmem:[%s318] sm:$0xf]
      %v657 = vld [vmem:[%s331] sm:$0x3]
      %v660 = vunpack.c.l.s4 1983009808
      %v661 = vunpack.c.0.s8 %v660
      %v662 = vlaneseq
      %v663 = vshrl.u32 %v662, 7
      %v664 = vsub.s32 %v661, %v663
      %v665 = vrot.slane %v656, %v664
      %666 = vrot.lane.b32.xlu0 %v665, 111
      %v667 = vpop.permute.xlu0 %666
      %v668 = vrot.slane %v667, 4
      %vm669 = vcmask 908288
      %v670 = vsel %vm669, %v667, %v668
      %vm672 = vcmask 906244
      %vm673 = vmor %vm672, %vm530
      %674 = vst.msk [vmem:[#allocation2 + $0x10] sm:$0x33] %vm673, %v670
      %v677 = vunpack.c.l.s4 1983009808
      %v678 = vunpack.c.0.s8 %v677
      %v679 = vlaneseq
      %v680 = vshrl.u32 %v679, 7
      %v681 = vsub.s32 %v678, %v680
      %v682 = vrot.slane %v657, %v681
      %683 = vrot.lane.b32.xlu0 %v682, 111
      %v684 = vpop.permute.xlu0 %683
      %vm686 = vcmask 1042296
      %687 = vst.msk [vmem:[#allocation2 + $0x14] sm:$0x3] %vm686, %v684
      %v688 = vld [vmem:[%s318] sm:$0xf]
      %v689 = vld [vmem:[%s331] sm:$0x3]
      %v690 = vld [vmem:[%s3] sm:$0x3]
      %v693 = vunpack.c.l.s4 1966171168
      %v694 = vunpack.c.0.s8 %v693
      %v695 = vlaneseq
      %v696 = vshrl.u32 %v695, 7
      %v697 = vsub.s32 %v694, %v696
      %v698 = vrot.slane %v690, %v697
      %v699 = vcombine.high %v698, %v698
      %v701 = vunpack.c.l.s4 1966171168
      %v702 = vunpack.c.0.s8 %v701
      %v703 = vlaneseq
      %v704 = vshrl.u32 %v703, 7
      %v705 = vsub.s32 %v702, %v704
      %v706 = vrot.slane %v698, %v705
      %v708 = vunpack.c.l.s4 1966171168
      %v709 = vunpack.c.0.s8 %v708
      %v710 = vlaneseq
      %v711 = vshrl.u32 %v710, 7
      %v712 = vsub.s32 %v709, %v711
      %v713 = vrot.slane %v699, %v712
      %v715 = vpack.i.b16 %v706, %v706
      %v717 = vlaneseq
      %v718 = vshrl.u32 %v717, 7
      %v719 = vsub.s32 0, %v718
      %v720 = vrot.slane %v715, %v719
      %v722 = vpack.i.b16 %v713, %v713
      %v724 = vlaneseq
      %v725 = vshrl.u32 %v724, 7
      %v726 = vsub.s32 0, %v725
      %v727 = vrot.slane %v722, %v726
      %v730 = vcombine.low %v720, %v727
      %v732 = vunpack.c.l.s4 1983009808
      %v733 = vunpack.c.0.s8 %v732
      %v734 = vlaneseq
      %v735 = vshrl.u32 %v734, 7
      %v736 = vsub.s32 %v733, %v735
      %v737 = vrot.slane %v730, %v736
      %738 = vrot.lane.b32.xlu0 %v737, 18
      %v739 = vpop.permute.xlu0 %738
      %v740 = vrot.slane %v739, 6
      %vm741 = vcmask 146432
      %v742 = vsel %vm741, %v740, %v739
      %v744 = vmul.bf16 %v688, %v742
      %v745 = vld [vmem:[%s3 + $0x1] sm:$0x1]
      %v747 = vpack.i.b16 %v745, %v745
      %v749 = vlaneseq
      %v750 = vshrl.u32 %v749, 7
      %v751 = vsub.s32 0, %v750
      %v752 = vrot.slane %v747, %v751
      %v755 = vunpack.c.l.s4 1983009808
      %v756 = vunpack.c.0.s8 %v755
      %v757 = vlaneseq
      %v758 = vshrl.u32 %v757, 7
      %v759 = vsub.s32 %v756, %v758
      %v760 = vrot.slane %v752, %v759
      %761 = vrot.lane.b32.xlu0 %v760, 18
      %v762 = vpop.permute.xlu0 %761
      %v764 = vmul.bf16 %v689, %v762
      %v766 = vcombine.low %v744, %v744
      %v768 = vunpack.c.l.s4 1983009808
      %v769 = vunpack.c.0.s8 %v768
      %v770 = vlaneseq
      %v771 = vshrl.u32 %v770, 7
      %v772 = vsub.s32 %v769, %v771
      %v773 = vrot.slane %v766, %v772
      %774 = vrot.lane.b32.xlu0 %v773, 110
      %v775 = vpop.permute.xlu0 %774
      %v776 = vrot.slane %v775, 4
      %vm777 = vcmask 900096
      %v778 = vsel %vm777, %v775, %v776
      %vm780 = vcmask 900102
      %vm781 = vmor %vm780, %vm421
      %782 = vst.msk [vmem:[#allocation2 + $0x10] sm:$0xcc] %vm781, %v778
      %v784 = vcombine.low %v764, %v764
      %v786 = vunpack.c.l.s4 1983009808
      %v787 = vunpack.c.0.s8 %v786
      %v788 = vlaneseq
      %v789 = vshrl.u32 %v788, 7
      %v790 = vsub.s32 %v787, %v789
      %v791 = vrot.slane %v784, %v790
      %792 = vrot.lane.b32.xlu0 %v791, 110
      %v793 = vpop.permute.xlu0 %792
      %vm795 = vcmask 1044338
      %796 = vst.msk [vmem:[#allocation2 + $0x14] sm:$0xc] %vm795, %v793
      %v797 = vld [vmem:[%s318] sm:$0xf]
      %v798 = vld [vmem:[%s331] sm:$0x3]
      %v799 = vld [vmem:[%s2] sm:$0x3]
      %v802 = vunpack.c.l.s4 1966171168
      %v803 = vunpack.c.0.s8 %v802
      %v804 = vlaneseq
      %v805 = vshrl.u32 %v804, 7
      %v806 = vsub.s32 %v803, %v805
      %v807 = vrot.slane %v799, %v806
      %v808 = vcombine.high %v807, %v807
      %v810 = vunpack.c.l.s4 1966171168
      %v811 = vunpack.c.0.s8 %v810
      %v812 = vlaneseq
      %v813 = vshrl.u32 %v812, 7
      %v814 = vsub.s32 %v811, %v813
      %v815 = vrot.slane %v807, %v814
      %v817 = vunpack.c.l.s4 1966171168
      %v818 = vunpack.c.0.s8 %v817
      %v819 = vlaneseq
      %v820 = vshrl.u32 %v819, 7
      %v821 = vsub.s32 %v818, %v820
      %v822 = vrot.slane %v808, %v821
      %v824 = vpack.i.b16 %v815, %v815
      %v826 = vlaneseq
      %v827 = vshrl.u32 %v826, 7
      %v828 = vsub.s32 0, %v827
      %v829 = vrot.slane %v824, %v828
      %v831 = vpack.i.b16 %v822, %v822
      %v833 = vlaneseq
      %v834 = vshrl.u32 %v833, 7
      %v835 = vsub.s32 0, %v834
      %v836 = vrot.slane %v831, %v835
      %v839 = vcombine.low %v829, %v836
      %v841 = vunpack.c.l.s4 1983009808
      %v842 = vunpack.c.0.s8 %v841
      %v843 = vlaneseq
      %v844 = vshrl.u32 %v843, 7
      %v845 = vsub.s32 %v842, %v844
      %v846 = vrot.slane %v839, %v845
      %847 = vrot.lane.b32.xlu0 %v846, 32
      %v848 = vpop.permute.xlu0 %847
      %v849 = vrot.slane %v848, 6
      %vm850 = vcmask 261120
      %v851 = vsel %vm850, %v849, %v848
      %v853 = vmul.bf16 %v797, %v851
      %v854 = vld [vmem:[%s2 + $0x1] sm:$0x1]
      %v856 = vpack.i.b16 %v854, %v854
      %v858 = vlaneseq
      %v859 = vshrl.u32 %v858, 7
      %v860 = vsub.s32 0, %v859
      %v861 = vrot.slane %v856, %v860
      %v864 = vunpack.c.l.s4 1983009808
      %v865 = vunpack.c.0.s8 %v864
      %v866 = vlaneseq
      %v867 = vshrl.u32 %v866, 7
      %v868 = vsub.s32 %v865, %v867
      %v869 = vrot.slane %v861, %v868
      %870 = vrot.lane.b32.xlu0 %v869, 32
      %v871 = vpop.permute.xlu0 %870
      %v873 = vmul.bf16 %v798, %v871
      %v876 = vunpack.c.l.s4 1983009808
      %v877 = vunpack.c.0.s8 %v876
      %v878 = vlaneseq
      %v879 = vshrl.u32 %v878, 7
      %v880 = vsub.s32 %v877, %v879
      %v881 = vrot.slane %v853, %v880
      %882 = vrot.lane.b32.xlu0 %v881, 96
      %v883 = vpop.permute.xlu0 %882
      %v884 = vrot.slane %v883, 4
      %vm885 = vcmask 785408
      %v886 = vsel %vm885, %v883, %v884
      %vm888 = vcmask 783364
      %vm889 = vmor %vm888, %vm530
      %890 = vst.msk [vmem:[#allocation2 + $0x18] sm:$0x33] %vm889, %v886
      %v893 = vunpack.c.l.s4 1983009808
      %v894 = vunpack.c.0.s8 %v893
      %v895 = vlaneseq
      %v896 = vshrl.u32 %v895, 7
      %v897 = vsub.s32 %v894, %v896
      %v898 = vrot.slane %v873, %v897
      %899 = vrot.lane.b32.xlu0 %v898, 96
      %v900 = vpop.permute.xlu0 %899
      %vm902 = vcmask 1042176
      %903 = vst.msk [vmem:[#allocation2 + $0x1c] sm:$0x3] %vm902, %v900
      %v904 = vld [vmem:[%s318] sm:$0xf]
      %v905 = vld [vmem:[%s331] sm:$0x3]
      %v907 = vcombine.low %v904, %v904
      %v909 = vunpack.c.l.s4 1983009808
      %v910 = vunpack.c.0.s8 %v909
      %v911 = vlaneseq
      %v912 = vshrl.u32 %v911, 7
      %v913 = vsub.s32 %v910, %v912
      %v914 = vrot.slane %v907, %v913
      %915 = vrot.lane.b32.xlu0 %v914, 95
      %v916 = vpop.permute.xlu0 %915
      %v917 = vrot.slane %v916, 4
      %vm918 = vcmask 777216
      %v919 = vsel %vm918, %v916, %v917
      %vm921 = vcmask 777222
      %vm922 = vmor %vm921, %vm421
      %923 = vst.msk [vmem:[#allocation2 + $0x18] sm:$0xcc] %vm922, %v919
      %v925 = vcombine.low %v905, %v905
      %v927 = vunpack.c.l.s4 1983009808
      %v928 = vunpack.c.0.s8 %v927
      %v929 = vlaneseq
      %v930 = vshrl.u32 %v929, 7
      %v931 = vsub.s32 %v928, %v930
      %v932 = vrot.slane %v925, %v931
      %933 = vrot.lane.b32.xlu0 %v932, 95
      %v934 = vpop.permute.xlu0 %933
      %vm936 = vcmask 1044218
      %937 = vst.msk [vmem:[#allocation2 + $0x1c] sm:$0xc] %vm936, %v934
      %v938 = vld [vmem:[%s318] sm:$0xf]
      %v939 = vld [vmem:[%s331] sm:$0x3]
      %v940 = vld [vmem:[%s3] sm:$0x3]
      %v943 = vunpack.c.l.s4 1966171168
      %v944 = vunpack.c.0.s8 %v943
      %v945 = vlaneseq
      %v946 = vshrl.u32 %v945, 7
      %v947 = vsub.s32 %v944, %v946
      %v948 = vrot.slane %v940, %v947
      %v949 = vcombine.high %v948, %v948
      %v951 = vunpack.c.l.s4 1966171168
      %v952 = vunpack.c.0.s8 %v951
      %v953 = vlaneseq
      %v954 = vshrl.u32 %v953, 7
      %v955 = vsub.s32 %v952, %v954
      %v956 = vrot.slane %v948, %v955
      %v958 = vunpack.c.l.s4 1966171168
      %v959 = vunpack.c.0.s8 %v958
      %v960 = vlaneseq
      %v961 = vshrl.u32 %v960, 7
      %v962 = vsub.s32 %v959, %v961
      %v963 = vrot.slane %v949, %v962
      %v965 = vpack.i.b16 %v956, %v956
      %v967 = vlaneseq
      %v968 = vshrl.u32 %v967, 7
      %v969 = vsub.s32 0, %v968
      %v970 = vrot.slane %v965, %v969
      %v972 = vpack.i.b16 %v963, %v963
      %v974 = vlaneseq
      %v975 = vshrl.u32 %v974, 7
      %v976 = vsub.s32 0, %v975
      %v977 = vrot.slane %v972, %v976
      %v980 = vcombine.low %v970, %v977
      %v982 = vunpack.c.l.s4 1983009808
      %v983 = vunpack.c.0.s8 %v982
      %v984 = vlaneseq
      %v985 = vshrl.u32 %v984, 7
      %v986 = vsub.s32 %v983, %v985
      %v987 = vrot.slane %v980, %v986
      %988 = vrot.lane.b32.xlu0 %v987, 34
      %v989 = vpop.permute.xlu0 %988
      %v990 = vrot.slane %v989, 6
      %vm991 = vcmask 277504
      %v992 = vsel %vm991, %v990, %v989
      %v994 = vmul.bf16 %v938, %v992
      %v995 = vld [vmem:[%s3 + $0x1] sm:$0x1]
      %v997 = vpack.i.b16 %v995, %v995
      %v999 = vlaneseq
      %v1000 = vshrl.u32 %v999, 7
      %v1001 = vsub.s32 0, %v1000
      %v1002 = vrot.slane %v997, %v1001
      %v1005 = vunpack.c.l.s4 1983009808
      %v1006 = vunpack.c.0.s8 %v1005
      %v1007 = vlaneseq
      %v1008 = vshrl.u32 %v1007, 7
      %v1009 = vsub.s32 %v1006, %v1008
      %v1010 = vrot.slane %v1002, %v1009
      %1011 = vrot.lane.b32.xlu0 %v1010, 34
      %v1012 = vpop.permute.xlu0 %1011
      %v1014 = vmul.bf16 %v939, %v1012
      %v1017 = vunpack.c.l.s4 1983009808
      %v1018 = vunpack.c.0.s8 %v1017
      %v1019 = vlaneseq
      %v1020 = vshrl.u32 %v1019, 7
      %v1021 = vsub.s32 %v1018, %v1020
      %v1022 = vrot.slane %v994, %v1021
      %1023 = vrot.lane.b32.xlu0 %v1022, 94
      %v1024 = vpop.permute.xlu0 %1023
      %v1025 = vrot.slane %v1024, 4
      %vm1026 = vcmask 769024
      %v1027 = vsel %vm1026, %v1024, %v1025
      %vm1029 = vcmask 766980
      %vm1030 = vmor %vm1029, %vm530
      %1031 = vst.msk [vmem:[#allocation2 + $0x20] sm:$0x33] %vm1030, %v1027
      %v1034 = vunpack.c.l.s4 1983009808
      %v1035 = vunpack.c.0.s8 %v1034
      %v1036 = vlaneseq
      %v1037 = vshrl.u32 %v1036, 7
      %v1038 = vsub.s32 %v1035, %v1037
      %v1039 = vrot.slane %v1014, %v1038
      %1040 = vrot.lane.b32.xlu0 %v1039, 94
      %v1041 = vpop.permute.xlu0 %1040
      %vm1043 = vcmask 1042160
      %1044 = vst.msk [vmem:[#allocation2 + $0x24] sm:$0x3] %vm1043, %v1041
      %v1045 = vld [vmem:[%s4] sm:$0xf]
      %v1046 = vld [vmem:[#allocation2] sm:$0xff]
      %v1047 = vld [vmem:[#allocation2 + $0x8] sm:$0xff]
      %v1048 = vld [vmem:[#allocation2 + $0x10] sm:$0xff]
      %v1049 = vld [vmem:[#allocation2 + $0x18] sm:$0xff]
      %v1050 = vld [vmem:[#allocation2 + $0x20] sm:$0x33]
      %v1051 = vld [vmem:[%s5] sm:$0xff]
      %1053 = vset.pattern.permute.xlu0 0
      %1054 = vperm.xlu0 %1053, %v1051
      %v1055 = vpop.permute.xlu0 %1054
      %v1062 = vunpack.c.l.b16 %v1046
      %v1063 = vunpack.c.h.b16 %v1046
      %v1064 = vunpack.c.l.b16 %v1047
      %v1065 = vunpack.c.h.b16 %v1047
      %v1066 = vunpack.c.l.b16 %v1048
      %v1067 = vunpack.c.h.b16 %v1048
      %v1068 = vunpack.c.l.b16 %v1049
      %v1069 = vunpack.c.h.b16 %v1049
      %v1070 = vunpack.c.l.b16 %v1050
      %v1071 = vunpack.c.h.b16 %v1050
      %v1072 = vpack.c.b16 %v1064, %v1062
      %v1073 = vpack.c.b16 %v1065, %v1063
      %v1074 = vpack.c.b16 %v1068, %v1066
      %v1075 = vpack.c.b16 %v1069, %v1067
      %v1076 = vpack.c.b16 %v1070, %v1070
      %v1077 = vpack.c.b16 %v1071, %v1071
      %vm1082 = vcmask 293888
      %v1084 = vsel %vm1082, %v1045, 0
      %v1087 = vsel %vm530, %v1076, 0
      %v1090 = vsel %vm530, %v1077, 0
      %1092 = vmatprep.subr.bf16.mxu0 %v1073
      %1093 = vmatpush1.bf16.msra.mxu0 %v1072
      %1094 = vmatprep.subr.bf16.mxu0 %v1075
      %1095 = vmatpush1.bf16.msra.mxu0 %v1074
      %1096 = vmatprep.subr.bf16.mxu0 %v1090
      %1097 = vmatpush1.bf16.msra.mxu0 %v1087
      %1098 = vmatprep.subr.bf16.mxu0 0
      %1099 = vmatpush1.bf16.msra.mxu0 0
      %1100 = vmatprep.subr.bf16.mxu0 0
      %1101 = vmatpush1.bf16.msra.mxu0 0
      %1102 = vmatprep.subr.bf16.mxu0 0
      %1103 = vmatpush1.bf16.msra.mxu0 0
      %1104 = vmatprep.subr.bf16.mxu0 0
      %1105 = vmatpush1.bf16.msra.mxu0 0
      %1106 = vmatprep.subr.bf16.mxu0 0
      %1107 = vmatpush1.bf16.msra.mxu0 0
      %1108 = vmatprep.subr.bf16.mxu0 0
      %1109 = vmatpush1.bf16.msra.mxu0 0
      %1110 = vmatprep.subr.bf16.mxu0 0
      %1111 = vmatpush1.bf16.msra.mxu0 0
      %1112 = vmatprep.subr.bf16.mxu0 0
      %1113 = vmatpush1.bf16.msra.mxu0 0
      %1114 = vmatprep.subr.bf16.mxu0 0
      %1115 = vmatpush1.bf16.msra.mxu0 0
      %1116 = vmatprep.subr.bf16.mxu0 0
      %1117 = vmatpush1.bf16.msra.mxu0 0
      %1118 = vmatprep.subr.bf16.mxu0 0
      %1119 = vmatpush1.bf16.msra.mxu0 0
      %1120 = vmatprep.subr.bf16.mxu0 0
      %1121 = vmatpush1.bf16.msra.mxu0 0
      %1122 = vmatprep.subr.bf16.mxu0 0
      %1123 = vmatpush1.bf16.msra.mxu0 0
      %1124 = vmatprep.mubr.bf16.mxu0 0
      %1125 = vmatmul.mubr.bf16.gmra.mrb[0].mxu0 %v1084
      %v1126 = vpop.f32.mrb[0].mxu0
      %v1127 = vadd.f32 %v1055, %v1126
      %v1128 = vpop.f32.mrb[0].mxu0
      %v1129 = vadd.f32 %v1055, %v1128
      %v1130 = vpop.f32.mrb[0].mxu0
      %v1131 = vpop.f32.mrb[0].mxu0
      %1132 = vdwg.mxu0
      %1133 = vst [vmem:[%s340] sm:$0xff] %v1127
      %1134 = vst [vmem:[%s340 + $0x8] sm:$0xff] %v1129
      %s1135 = smul.u32 2, %s22
      %p1136 = scmp.lt.s32.totalorder %s21, 1
      %s1137 = scalar_select %p1136, %s21, 1
      %p1138 = scmp.lt.s32.totalorder %s1135, 1
      %s1139 = scalar_select %p1138, %s1135, 1
      %s1140 = smul.addr %s1137, 2
      %s1141 = sadd.s32 %s1139, %s1140
      %s1142 = smul.addr %s1141, 8
      %s1143 = scalar_lea.vmem %s6, %s1142
      // Predicated region
      $region45: #{layer_wrapper_2d.1} parent=43 // pred_check
        %p1144 = pneg %p189
      $region46: #{layer_wrapper_2d.1} parent=43 // pred_check_branch
        %1146 = sbr.rel (%p1144) target = $region48
      $region47: #{layer_wrapper_2d.1} parent=43 // pred_region
        %s1147 = smul.u32 2, %s22
      $region48: #{layer_wrapper_2d.1} parent=43 // pred_fallthru
        _
    $region44: #{layer_wrapper_2d.1} parent=5 // pred_fallthru
      _
    %p1148 = scmp.le.s32.totalorder 2, %s12
    // Predicated region
    $region49: #{layer_wrapper_2d.1} parent=5 // pred_check
      %p1149 = pneg %p1148
    $region50: #{layer_wrapper_2d.1} parent=5 // pred_check_branch
      %1151 = sbr.rel (%p1149) target = $region52
    $region51: #{layer_wrapper_2d.1} parent=5 // pred_region
      %s1152 = ssub.s32 %s12, 2
      // Predicated region
      $region53: #{layer_wrapper_2d.1} parent=51 // pred_check
        %p1153 = pneg %p195
      $region54: #{layer_wrapper_2d.1} parent=51 // pred_check_branch
        %1155 = sbr.rel (%p1153) target = $region56
      $region55: #{layer_wrapper_2d.1} parent=51 // pred_region
        %s1156 = smul.u32 2, %s24
        %p1157 = scmp.lt.s32.totalorder %s23, 1
        %s1158 = scalar_select %p1157, %s23, 1
        %p1159 = scmp.lt.s32.totalorder %s1156, 1
        %s1160 = scalar_select %p1159, %s1156, 1
        %s1161 = smul.addr %s1158, 2
        %s1162 = sadd.s32 %s1160, %s1161
        %s1163 = smul.addr %s1162, 8
        %s1164 = scalar_lea.vmem %s6, %s1163
      $region56: #{layer_wrapper_2d.1} parent=51 // pred_fallthru
        _
    $region52: #{layer_wrapper_2d.1} parent=5 // pred_fallthru
      _
  $region6: #{layer_wrapper_2d.1} parent=0 // loop_footer
    %s16 = sadd.s32 1, %s12
  $region7: #{layer_wrapper_2d.1} parent=0 // loop_footer_branch
    %11 = sbr.rel target = $region3
  $region8: #{layer_wrapper_2d.1} parent=0 // loop_exit
    _

</llo_original>
